<compile_context>
chip_gen: v5e
topology: v5e:2x2
jax: 0.10.0
libtpu: 0.0.40
codegen_flags: <defaults>
</compile_context>

<pallas_src>
import jax
import jax.numpy as jnp
from jax.experimental import pallas as pl
from jax.experimental.pallas import tpu as pltpu

# Keep XLA-reference and in-kernel matmuls at full f32 accuracy so the
# algebraically folded kernel and the sequential reference agree tightly.
jax.config.update("jax_default_matmul_precision", "highest")


def _fused_conv1x1_chain_kernel(w_ref, b_col_ref, b_row_ref, x_ref, o_ref):
    # w_ref:     (Cout, Cin) f32   raw conv weight
    # b_col_ref: (Cout, 1)   f32   raw bias as a column (broadcast over pixels)
    # b_row_ref: (1, Cin)    f32   raw bias as a row (for VPU bias polynomial)
    # x_ref:     (Cin, H*W)  f32   NCHW input viewed channels-major (N == 1)
    # o_ref:     (Cout, H*W) f32   already NCHW layout for N == 1
    w = w_ref[...]
    b_col = b_col_ref[...]
    b_row = b_row_ref[...]
    x = x_ref[...]

    # Effective weight of the shared-weight chain: W_eff = 2W + W^2 + W^3 (MXU).
    w2 = jnp.dot(w, w, preferred_element_type=jnp.float32)
    w3 = jnp.dot(w2, w, preferred_element_type=jnp.float32)
    w_eff = 2.0 * w + w2 + w3

    # Effective bias b_eff = 4b + 2 W b + W^2 b, computed as broadcast-multiply
    # + lane reduce (VPU/XLU) to avoid degenerate 1-lane matmuls.
    wb = jnp.sum(w * b_row, axis=1, keepdims=True)     # (Cout, 1) == W @ b
    w2b = jnp.sum(w2 * b_row, axis=1, keepdims=True)   # (Cout, 1) == W^2 @ b
    b_eff = 4.0 * b_col + 2.0 * wb + w2b

    # Main matmul over pixels + bias + ReLU (relu(relu(.)) == relu(.)).
    y = jnp.dot(w_eff, x, preferred_element_type=jnp.float32)
    o_ref[...] = jnp.maximum(y + b_eff, 0.0)


@jax.jit
def model_forward(x_nchw, weight, bias):
    """x_nchw: (1, C, H, W) f32; weight: (Cout, Cin, 1, 1); bias: (Cout,)."""
    N, C, H, W = x_nchw.shape
    Cout, Cin = weight.shape[0], weight.shape[1]
    assert N == 1, "layout trick (C, H*W view == NCHW) requires N == 1"
    assert Cin == C == Cout, "algebraic fold requires Cin == Cout"
    HW = H * W
    # TODO(synk): for N > 1 or large H*W, add a 1-D 'parallel' pixel/batch grid
    # with lane-dense (multiple-of-128) blocks so v7x's second TensorCore is used.

    # Free views / tiny casts — all fused by jit, no extra dispatches.
    x_cm = x_nchw.reshape(C, HW).astype(jnp.float32)        # NCHW view, N == 1
    w_mat = weight.reshape(Cout, Cin).astype(jnp.float32)   # (Cout, Cin)
    b_col = bias.reshape(Cout, 1).astype(jnp.float32)
    b_row = bias.reshape(1, Cin).astype(jnp.float32)

    vmem = pl.BlockSpec(memory_space=pltpu.MemorySpace.VMEM)  # whole array, no grid
    out_cm = pl.pallas_call(
        _fused_conv1x1_chain_kernel,
        out_shape=jax.ShapeDtypeStruct((Cout, HW), jnp.float32),
        in_specs=[vmem, vmem, vmem, vmem],
        out_specs=vmem,
    )(w_mat, b_col, b_row, x_cm)

    # (Cout, H*W) is exactly NCHW for N == 1.
    return out_cm.reshape(N, Cout, H, W)


if __name__ == "__main__":
    key = jax.random.PRNGKey(0)
    kx, kw, kb = jax.random.split(key, 3)

    # Shapes implied by the module: x1 = (1, 16, 8, 8), Conv2d(16, 16, 1).
    x1 = jax.random.normal(kx, (1, 16, 8, 8), dtype=jnp.float32)
    fan_in = 16 * 1 * 1
    bound = 1.0 / (fan_in ** 0.5)
    weight = jax.random.uniform(kw, (16, 16, 1, 1), jnp.float32, -bound, bound)
    bias = jax.random.uniform(kb, (16,), jnp.float32, -bound, bound)

    out = model_forward(x1, weight, bias)
    jax.block_until_ready(out)

    # Reference: the original chained semantics in plain JAX (channels-major).
    def ref(x):
        wm = weight.reshape(16, 16)           # (Cout, Cin)
        xf = x.reshape(16, 8 * 8)             # (Cin, HW), N == 1
        bc = bias[:, None]
        v1 = wm @ xf + bc
        v2 = wm @ v1 + bc
        v3 = wm @ v2 + bc
        v6 = jnp.maximum((v1 + v2) + (v1 + v3), 0.0)
        v7 = jnp.maximum(v6, 0.0)
        return v7.reshape(1, 16, 8, 8)

    expected = ref(x1)
    assert out.shape == (1, 16, 8, 8)
    assert jnp.allclose(out, expected, atol=2e-5, rtol=1e-4), (
        float(jnp.max(jnp.abs(out - expected))))
    print("KERNEL_OK")
</pallas_src>

<mosaic_0001>
module attributes {stable_mosaic.version = 11 : i64} {
  func.func @_fused_conv1x1_chain_kernel(%arg0: memref<16x16xf32, #tpu.memory_space<vmem>>, %arg1: memref<16x1xf32, #tpu.memory_space<vmem>>, %arg2: memref<1x16xf32, #tpu.memory_space<vmem>>, %arg3: memref<16x64xf32, #tpu.memory_space<vmem>>, %arg4: memref<16x64xf32, #tpu.memory_space<vmem>>) attributes {dimension_semantics = [], scalar_prefetch = 0 : i64, scratch_operands = 0 : i64, tpu.core_type = #tpu.core_type<tc>} {
    %c0 = arith.constant 0 : index
    %c0_0 = arith.constant 0 : index
    %0 = vector.load %arg0[%c0, %c0_0] : memref<16x16xf32, #tpu.memory_space<vmem>>, vector<16x16xf32>
    %c0_1 = arith.constant 0 : index
    %c0_2 = arith.constant 0 : index
    %1 = vector.load %arg1[%c0_1, %c0_2] : memref<16x1xf32, #tpu.memory_space<vmem>>, vector<16x1xf32>
    %c0_3 = arith.constant 0 : index
    %c0_4 = arith.constant 0 : index
    %2 = vector.load %arg2[%c0_3, %c0_4] : memref<1x16xf32, #tpu.memory_space<vmem>>, vector<1x16xf32>
    %c0_5 = arith.constant 0 : index
    %c0_6 = arith.constant 0 : index
    %3 = vector.load %arg3[%c0_5, %c0_6] : memref<16x64xf32, #tpu.memory_space<vmem>>, vector<16x64xf32>
    %cst = arith.constant dense<0.000000e+00> : vector<16x16xf32>
    %4 = tpu.matmul %0, %0, %cst {dimension_numbers = #tpu.dot_dimension_numbers<[1], [0], [0], [1], [0, 0, 1, 1], [], []>, precision = #tpu.contract_precision<fp32>} : vector<16x16xf32>, vector<16x16xf32>, vector<16x16xf32> -> vector<16x16xf32>
    %cst_7 = arith.constant dense<0.000000e+00> : vector<16x16xf32>
    %5 = tpu.matmul %4, %0, %cst_7 {dimension_numbers = #tpu.dot_dimension_numbers<[1], [0], [0], [1], [0, 0, 1, 1], [], []>, precision = #tpu.contract_precision<fp32>} : vector<16x16xf32>, vector<16x16xf32>, vector<16x16xf32> -> vector<16x16xf32>
    %cst_8 = arith.constant 2.000000e+00 : f32
    %6 = vector.broadcast %cst_8 : f32 to vector<16x16xf32>
    %7 = arith.mulf %6, %0 : vector<16x16xf32>
    %8 = arith.addf %7, %4 : vector<16x16xf32>
    %9 = arith.addf %8, %5 : vector<16x16xf32>
    %10 = vector.broadcast %2 : vector<1x16xf32> to vector<16x16xf32>
    %11 = arith.mulf %0, %10 : vector<16x16xf32>
    %cst_9 = arith.constant dense<0.000000e+00> : vector<16xf32>
    %12 = vector.multi_reduction <add>, %11, %cst_9 [1] : vector<16x16xf32> to vector<16xf32>
    %13 = vector.shape_cast %12 : vector<16xf32> to vector<16x1xf32>
    %14 = vector.broadcast %2 : vector<1x16xf32> to vector<16x16xf32>
    %15 = arith.mulf %4, %14 : vector<16x16xf32>
    %cst_10 = arith.constant dense<0.000000e+00> : vector<16xf32>
    %16 = vector.multi_reduction <add>, %15, %cst_10 [1] : vector<16x16xf32> to vector<16xf32>
    %17 = vector.shape_cast %16 : vector<16xf32> to vector<16x1xf32>
    %cst_11 = arith.constant 4.000000e+00 : f32
    %18 = vector.broadcast %cst_11 : f32 to vector<16x1xf32>
    %19 = arith.mulf %18, %1 : vector<16x1xf32>
    %cst_12 = arith.constant 2.000000e+00 : f32
    %20 = vector.broadcast %cst_12 : f32 to vector<16x1xf32>
    %21 = arith.mulf %20, %13 : vector<16x1xf32>
    %22 = arith.addf %19, %21 : vector<16x1xf32>
    %23 = arith.addf %22, %17 : vector<16x1xf32>
    %cst_13 = arith.constant dense<0.000000e+00> : vector<16x64xf32>
    %24 = tpu.matmul %9, %3, %cst_13 {dimension_numbers = #tpu.dot_dimension_numbers<[1], [0], [0], [1], [0, 0, 1, 1], [], []>, precision = #tpu.contract_precision<fp32>} : vector<16x16xf32>, vector<16x64xf32>, vector<16x64xf32> -> vector<16x64xf32>
    %25 = vector.broadcast %23 : vector<16x1xf32> to vector<16x64xf32>
    %26 = arith.addf %24, %25 : vector<16x64xf32>
    %cst_14 = arith.constant 0.000000e+00 : f32
    %27 = vector.broadcast %cst_14 : f32 to vector<16x64xf32>
    %28 = arith.maximumf %26, %27 : vector<16x64xf32>
    %c0_15 = arith.constant 0 : index
    %c0_16 = arith.constant 0 : index
    %29 = vector.load %arg4[%c0_15, %c0_16] : memref<16x64xf32, #tpu.memory_space<vmem>>, vector<16x64xf32>
    tpu.vector_store %arg4[%c0_15, %c0_16], %28 {strides = array<i32>} : memref<16x64xf32, #tpu.memory_space<vmem>>, vector<16x64xf32>,
    return
  }
}

</mosaic_0001>

<llo_original>
// kernel: model_forward.1
$region0: #{model_forward.1}
  #allocation0 [shape = 'u32[]', space=smem, size = 0x4, offset = 0x4, fixed_abs, tag = 'smem constant byte address 0x4 - core index']
  #allocation1 [shape = 'u32[72,128]{1,0:T(1,128)}', space=vmem, size = 0x9000, scoped, tag = 'internal scratch']
  %s0 = inlined_call_operand.vmem [shape: f32[16,16], index: 0, kind: input, shape index: {}]
  %s1 = inlined_call_operand.vmem [shape: f32[16,1], index: 1, kind: input, shape index: {}]
  %s2 = inlined_call_operand.vmem [shape: f32[1,16], index: 2, kind: input, shape index: {}]
  %s3 = inlined_call_operand.vmem [shape: f32[16,64], index: 3, kind: input, shape index: {}]
  %s4 = inlined_call_operand.vmem [shape: f32[16,64], index: 4, kind: output, shape index: {}]
  %s5 = sld [smem:[#allocation0]]
  $region26: #{model_forward.1} parent=0
    _
  %s7 = ssub.s32 1, %s5
  %s8 = scalar_select 0, %s7, %s5
  // Predicated region
  $region2: #{model_forward.1} parent=0 // pred_check
    _
  $region3: #{model_forward.1} parent=0 // pred_check_branch
    %10 = sbr.rel (0) target = $region5
  $region4: #{model_forward.1} parent=0 // pred_region
    _
  $region5: #{model_forward.1} parent=0 // pred_fallthru
    _
  // Predicated region
  $region6: #{model_forward.1} parent=0 // pred_check
    _
  $region7: #{model_forward.1} parent=0 // pred_check_branch
    %12 = sbr.rel (0) target = $region9
  $region8: #{model_forward.1} parent=0 // pred_region
    _
  $region9: #{model_forward.1} parent=0 // pred_fallthru
    _
  // Predicated region
  $region10: #{model_forward.1} parent=0 // pred_check
    _
  $region11: #{model_forward.1} parent=0 // pred_check_branch
    %14 = sbr.rel (0) target = $region13
  $region12: #{model_forward.1} parent=0 // pred_region
    _
  $region13: #{model_forward.1} parent=0 // pred_fallthru
    _
  // Predicated region
  $region14: #{model_forward.1} parent=0 // pred_check
    _
  $region15: #{model_forward.1} parent=0 // pred_check_branch
    %16 = sbr.rel (0) target = $region17
  $region16: #{model_forward.1} parent=0 // pred_region
    _
  $region17: #{model_forward.1} parent=0 // pred_fallthru
    _
  %v17 = vld [vmem:[%s0] sm:$0xff]
  %v18 = vld [vmem:[%s0 + $0x8] sm:$0xff]
  %v19 = vld [vmem:[%s1] sm:$0xff]
  %v20 = vld [vmem:[%s1 + $0x8] sm:$0xff]
  %v21 = vld [vmem:[%s2] sm:$0x1]
  %v22 = vld [vmem:[%s3] sm:$0xff]
  %v23 = vld [vmem:[%s3 + $0x8] sm:$0xff]
  %vm24 = vcmask 130048
  %v26 = vsel %vm24, %v17, 0
  %v29 = vsel %vm24, %v18, 0
  %31 = vmatpush.msra.mxu0 0.0
  %32 = vmatpush.msra.mxu0 0.0
  %33 = vmatpush.msra.mxu0 0.0
  %34 = vmatpush.msra.mxu0 0.0
  %35 = vmatpush.msra.mxu0 0.0
  %36 = vmatpush.msra.mxu0 0.0
  %37 = vmatpush.msra.mxu0 0.0
  %38 = vmatpush.msra.mxu0 0.0
  %39 = vmatpush.msra.mxu0 0.0
  %40 = vmatpush.msra.mxu0 0.0
  %41 = vmatpush.msra.mxu0 0.0
  %42 = vmatpush.msra.mxu0 0.0
  %43 = vmatpush.msra.mxu0 0.0
  %44 = vmatpush.msra.mxu0 0.0
  %v45 = vand.u32 %v18, 4294901760
  %46 = vmatpush.msra.mxu0 %v45
  %v47 = vand.u32 %v17, 4294901760
  %48 = vmatpush.msra.mxu0 %v47
  %v49 = vand.u32 %v26, 4294901760
  %v50 = vsub.f32 %v26, %v49
  %v51 = vand.u32 %v50, 4294901760
  %v52 = vsub.f32 %v50, %v51
  %v53 = vand.u32 %v52, 4294901760
  %54 = vmatmul.f32.gmra.mxu0 %v53
  %v55 = vpop.f32.mrf.mxu0
  %v56 = vadd.f32 0.0, %v55
  %v57 = vand.u32 %v29, 4294901760
  %v58 = vsub.f32 %v29, %v57
  %v59 = vand.u32 %v58, 4294901760
  %v60 = vsub.f32 %v58, %v59
  %v61 = vand.u32 %v60, 4294901760
  %62 = vmatmul.f32.gmra.mxu0 %v61
  %v63 = vpop.f32.mrf.mxu0
  %v64 = vadd.f32 0.0, %v63
  %65 = vdwg.mxu0
  %66 = vmatpush.msra.mxu0 0.0
  %67 = vmatpush.msra.mxu0 0.0
  %68 = vmatpush.msra.mxu0 0.0
  %69 = vmatpush.msra.mxu0 0.0
  %70 = vmatpush.msra.mxu0 0.0
  %71 = vmatpush.msra.mxu0 0.0
  %72 = vmatpush.msra.mxu0 0.0
  %73 = vmatpush.msra.mxu0 0.0
  %74 = vmatpush.msra.mxu0 0.0
  %75 = vmatpush.msra.mxu0 0.0
  %76 = vmatpush.msra.mxu0 0.0
  %77 = vmatpush.msra.mxu0 0.0
  %78 = vmatpush.msra.mxu0 0.0
  %79 = vmatpush.msra.mxu0 0.0
  %v80 = vand.u32 %v18, 4294901760
  %v81 = vsub.f32 %v18, %v80
  %v82 = vand.u32 %v81, 4294901760
  %v83 = vsub.f32 %v81, %v82
  %v84 = vand.u32 %v83, 4294901760
  %85 = vmatpush.msra.mxu0 %v84
  %v86 = vand.u32 %v17, 4294901760
  %v87 = vsub.f32 %v17, %v86
  %v88 = vand.u32 %v87, 4294901760
  %v89 = vsub.f32 %v87, %v88
  %v90 = vand.u32 %v89, 4294901760
  %91 = vmatpush.msra.mxu0 %v90
  %v92 = vand.u32 %v26, 4294901760
  %93 = vmatmul.f32.gmra.mxu0 %v92
  %v94 = vpop.f32.mrf.mxu0
  %v95 = vadd.f32 %v56, %v94
  %v96 = vand.u32 %v29, 4294901760
  %97 = vmatmul.f32.gmra.mxu0 %v96
  %v98 = vpop.f32.mrf.mxu0
  %v99 = vadd.f32 %v64, %v98
  %100 = vdwg.mxu0
  %101 = vmatpush.msra.mxu0 0.0
  %102 = vmatpush.msra.mxu0 0.0
  %103 = vmatpush.msra.mxu0 0.0
  %104 = vmatpush.msra.mxu0 0.0
  %105 = vmatpush.msra.mxu0 0.0
  %106 = vmatpush.msra.mxu0 0.0
  %107 = vmatpush.msra.mxu0 0.0
  %108 = vmatpush.msra.mxu0 0.0
  %109 = vmatpush.msra.mxu0 0.0
  %110 = vmatpush.msra.mxu0 0.0
  %111 = vmatpush.msra.mxu0 0.0
  %112 = vmatpush.msra.mxu0 0.0
  %113 = vmatpush.msra.mxu0 0.0
  %114 = vmatpush.msra.mxu0 0.0
  %v115 = vand.u32 %v18, 4294901760
  %v116 = vsub.f32 %v18, %v115
  %117 = vmatpush.msra.mxu0 %v116
  %v118 = vand.u32 %v17, 4294901760
  %v119 = vsub.f32 %v17, %v118
  %120 = vmatpush.msra.mxu0 %v119
  %v121 = vand.u32 %v26, 4294901760
  %v122 = vsub.f32 %v26, %v121
  %123 = vmatmul.f32.gmra.mxu0 %v122
  %v124 = vpop.f32.mrf.mxu0
  %v125 = vadd.f32 %v95, %v124
  %v126 = vand.u32 %v29, 4294901760
  %v127 = vsub.f32 %v29, %v126
  %128 = vmatmul.f32.gmra.mxu0 %v127
  %v129 = vpop.f32.mrf.mxu0
  %v130 = vadd.f32 %v99, %v129
  %131 = vdwg.mxu0
  %132 = vmatpush.msra.mxu0 0.0
  %133 = vmatpush.msra.mxu0 0.0
  %134 = vmatpush.msra.mxu0 0.0
  %135 = vmatpush.msra.mxu0 0.0
  %136 = vmatpush.msra.mxu0 0.0
  %137 = vmatpush.msra.mxu0 0.0
  %138 = vmatpush.msra.mxu0 0.0
  %139 = vmatpush.msra.mxu0 0.0
  %140 = vmatpush.msra.mxu0 0.0
  %141 = vmatpush.msra.mxu0 0.0
  %142 = vmatpush.msra.mxu0 0.0
  %143 = vmatpush.msra.mxu0 0.0
  %144 = vmatpush.msra.mxu0 0.0
  %145 = vmatpush.msra.mxu0 0.0
  %v146 = vand.u32 %v18, 4294901760
  %147 = vmatpush.msra.mxu0 %v146
  %v148 = vand.u32 %v17, 4294901760
  %149 = vmatpush.msra.mxu0 %v148
  %v150 = vand.u32 %v26, 4294901760
  %v151 = vsub.f32 %v26, %v150
  %v152 = vand.u32 %v151, 4294901760
  %153 = vmatmul.f32.gmra.mxu0 %v152
  %v154 = vpop.f32.mrf.mxu0
  %v155 = vadd.f32 %v125, %v154
  %v156 = vand.u32 %v29, 4294901760
  %v157 = vsub.f32 %v29, %v156
  %v158 = vand.u32 %v157, 4294901760
  %159 = vmatmul.f32.gmra.mxu0 %v158
  %v160 = vpop.f32.mrf.mxu0
  %v161 = vadd.f32 %v130, %v160
  %162 = vdwg.mxu0
  %163 = vmatpush.msra.mxu0 0.0
  %164 = vmatpush.msra.mxu0 0.0
  %165 = vmatpush.msra.mxu0 0.0
  %166 = vmatpush.msra.mxu0 0.0
  %167 = vmatpush.msra.mxu0 0.0
  %168 = vmatpush.msra.mxu0 0.0
  %169 = vmatpush.msra.mxu0 0.0
  %170 = vmatpush.msra.mxu0 0.0
  %171 = vmatpush.msra.mxu0 0.0
  %172 = vmatpush.msra.mxu0 0.0
  %173 = vmatpush.msra.mxu0 0.0
  %174 = vmatpush.msra.mxu0 0.0
  %175 = vmatpush.msra.mxu0 0.0
  %176 = vmatpush.msra.mxu0 0.0
  %v177 = vand.u32 %v18, 4294901760
  %v178 = vsub.f32 %v18, %v177
  %v179 = vand.u32 %v178, 4294901760
  %180 = vmatpush.msra.mxu0 %v179
  %v181 = vand.u32 %v17, 4294901760
  %v182 = vsub.f32 %v17, %v181
  %v183 = vand.u32 %v182, 4294901760
  %184 = vmatpush.msra.mxu0 %v183
  %v185 = vand.u32 %v26, 4294901760
  %186 = vmatmul.f32.gmra.mxu0 %v185
  %v187 = vpop.f32.mrf.mxu0
  %v188 = vadd.f32 %v155, %v187
  %v189 = vand.u32 %v29, 4294901760
  %190 = vmatmul.f32.gmra.mxu0 %v189
  %v191 = vpop.f32.mrf.mxu0
  %v192 = vadd.f32 %v161, %v191
  %193 = vdwg.mxu0
  %194 = vmatpush.msra.mxu0 0.0
  %195 = vmatpush.msra.mxu0 0.0
  %196 = vmatpush.msra.mxu0 0.0
  %197 = vmatpush.msra.mxu0 0.0
  %198 = vmatpush.msra.mxu0 0.0
  %199 = vmatpush.msra.mxu0 0.0
  %200 = vmatpush.msra.mxu0 0.0
  %201 = vmatpush.msra.mxu0 0.0
  %202 = vmatpush.msra.mxu0 0.0
  %203 = vmatpush.msra.mxu0 0.0
  %204 = vmatpush.msra.mxu0 0.0
  %205 = vmatpush.msra.mxu0 0.0
  %206 = vmatpush.msra.mxu0 0.0
  %207 = vmatpush.msra.mxu0 0.0
  %v208 = vand.u32 %v18, 4294901760
  %209 = vmatpush.msra.mxu0 %v208
  %v210 = vand.u32 %v17, 4294901760
  %211 = vmatpush.msra.mxu0 %v210
  %v212 = vand.u32 %v26, 4294901760
  %213 = vmatmul.f32.gmra.mxu0 %v212
  %v214 = vpop.f32.mrf.mxu0
  %v215 = vadd.f32 %v188, %v214
  %v216 = vand.u32 %v29, 4294901760
  %217 = vmatmul.f32.gmra.mxu0 %v216
  %v218 = vpop.f32.mrf.mxu0
  %v219 = vadd.f32 %v192, %v218
  %220 = vdwg.mxu0
  %v222 = vsel %vm24, %v215, 0
  %v225 = vsel %vm24, %v219, 0
  %227 = vmatpush.msra.mxu0 0.0
  %228 = vmatpush.msra.mxu0 0.0
  %229 = vmatpush.msra.mxu0 0.0
  %230 = vmatpush.msra.mxu0 0.0
  %231 = vmatpush.msra.mxu0 0.0
  %232 = vmatpush.msra.mxu0 0.0
  %233 = vmatpush.msra.mxu0 0.0
  %234 = vmatpush.msra.mxu0 0.0
  %235 = vmatpush.msra.mxu0 0.0
  %236 = vmatpush.msra.mxu0 0.0
  %237 = vmatpush.msra.mxu0 0.0
  %238 = vmatpush.msra.mxu0 0.0
  %239 = vmatpush.msra.mxu0 0.0
  %240 = vmatpush.msra.mxu0 0.0
  %v241 = vand.u32 %v18, 4294901760
  %242 = vmatpush.msra.mxu0 %v241
  %v243 = vand.u32 %v17, 4294901760
  %244 = vmatpush.msra.mxu0 %v243
  %v245 = vand.u32 %v222, 4294901760
  %v246 = vsub.f32 %v222, %v245
  %v247 = vand.u32 %v246, 4294901760
  %v248 = vsub.f32 %v246, %v247
  %v249 = vand.u32 %v248, 4294901760
  %250 = vmatmul.f32.gmra.mxu0 %v249
  %v251 = vpop.f32.mrf.mxu0
  %v252 = vadd.f32 0.0, %v251
  %v253 = vand.u32 %v225, 4294901760
  %v254 = vsub.f32 %v225, %v253
  %v255 = vand.u32 %v254, 4294901760
  %v256 = vsub.f32 %v254, %v255
  %v257 = vand.u32 %v256, 4294901760
  %258 = vmatmul.f32.gmra.mxu0 %v257
  %v259 = vpop.f32.mrf.mxu0
  %v260 = vadd.f32 0.0, %v259
  %261 = vdwg.mxu0
  %262 = vmatpush.msra.mxu0 0.0
  %263 = vmatpush.msra.mxu0 0.0
  %264 = vmatpush.msra.mxu0 0.0
  %265 = vmatpush.msra.mxu0 0.0
  %266 = vmatpush.msra.mxu0 0.0
  %267 = vmatpush.msra.mxu0 0.0
  %268 = vmatpush.msra.mxu0 0.0
  %269 = vmatpush.msra.mxu0 0.0
  %270 = vmatpush.msra.mxu0 0.0
  %271 = vmatpush.msra.mxu0 0.0
  %272 = vmatpush.msra.mxu0 0.0
  %273 = vmatpush.msra.mxu0 0.0
  %274 = vmatpush.msra.mxu0 0.0
  %275 = vmatpush.msra.mxu0 0.0
  %v276 = vand.u32 %v18, 4294901760
  %v277 = vsub.f32 %v18, %v276
  %v278 = vand.u32 %v277, 4294901760
  %v279 = vsub.f32 %v277, %v278
  %v280 = vand.u32 %v279, 4294901760
  %281 = vmatpush.msra.mxu0 %v280
  %v282 = vand.u32 %v17, 4294901760
  %v283 = vsub.f32 %v17, %v282
  %v284 = vand.u32 %v283, 4294901760
  %v285 = vsub.f32 %v283, %v284
  %v286 = vand.u32 %v285, 4294901760
  %287 = vmatpush.msra.mxu0 %v286
  %v288 = vand.u32 %v222, 4294901760
  %289 = vmatmul.f32.gmra.mxu0 %v288
  %v290 = vpop.f32.mrf.mxu0
  %v291 = vadd.f32 %v252, %v290
  %v292 = vand.u32 %v225, 4294901760
  %293 = vmatmul.f32.gmra.mxu0 %v292
  %v294 = vpop.f32.mrf.mxu0
  %v295 = vadd.f32 %v260, %v294
  %296 = vdwg.mxu0
  %297 = vmatpush.msra.mxu0 0.0
  %298 = vmatpush.msra.mxu0 0.0
  %299 = vmatpush.msra.mxu0 0.0
  %300 = vmatpush.msra.mxu0 0.0
  %301 = vmatpush.msra.mxu0 0.0
  %302 = vmatpush.msra.mxu0 0.0
  %303 = vmatpush.msra.mxu0 0.0
  %304 = vmatpush.msra.mxu0 0.0
  %305 = vmatpush.msra.mxu0 0.0
  %306 = vmatpush.msra.mxu0 0.0
  %307 = vmatpush.msra.mxu0 0.0
  %308 = vmatpush.msra.mxu0 0.0
  %309 = vmatpush.msra.mxu0 0.0
  %310 = vmatpush.msra.mxu0 0.0
  %v311 = vand.u32 %v18, 4294901760
  %v312 = vsub.f32 %v18, %v311
  %313 = vmatpush.msra.mxu0 %v312
  %v314 = vand.u32 %v17, 4294901760
  %v315 = vsub.f32 %v17, %v314
  %316 = vmatpush.msra.mxu0 %v315
  %v317 = vand.u32 %v222, 4294901760
  %v318 = vsub.f32 %v222, %v317
  %319 = vmatmul.f32.gmra.mxu0 %v318
  %v320 = vpop.f32.mrf.mxu0
  %v321 = vadd.f32 %v291, %v320
  %v322 = vand.u32 %v225, 4294901760
  %v323 = vsub.f32 %v225, %v322
  %324 = vmatmul.f32.gmra.mxu0 %v323
  %v325 = vpop.f32.mrf.mxu0
  %v326 = vadd.f32 %v295, %v325
  %327 = vdwg.mxu0
  %328 = vmatpush.msra.mxu0 0.0
  %329 = vmatpush.msra.mxu0 0.0
  %330 = vmatpush.msra.mxu0 0.0
  %331 = vmatpush.msra.mxu0 0.0
  %332 = vmatpush.msra.mxu0 0.0
  %333 = vmatpush.msra.mxu0 0.0
  %334 = vmatpush.msra.mxu0 0.0
  %335 = vmatpush.msra.mxu0 0.0
  %336 = vmatpush.msra.mxu0 0.0
  %337 = vmatpush.msra.mxu0 0.0
  %338 = vmatpush.msra.mxu0 0.0
  %339 = vmatpush.msra.mxu0 0.0
  %340 = vmatpush.msra.mxu0 0.0
  %341 = vmatpush.msra.mxu0 0.0
  %v342 = vand.u32 %v18, 4294901760
  %343 = vmatpush.msra.mxu0 %v342
  %v344 = vand.u32 %v17, 4294901760
  %345 = vmatpush.msra.mxu0 %v344
  %v346 = vand.u32 %v222, 4294901760
  %v347 = vsub.f32 %v222, %v346
  %v348 = vand.u32 %v347, 4294901760
  %349 = vmatmul.f32.gmra.mxu0 %v348
  %v350 = vpop.f32.mrf.mxu0
  %v351 = vadd.f32 %v321, %v350
  %v352 = vand.u32 %v225, 4294901760
  %v353 = vsub.f32 %v225, %v352
  %v354 = vand.u32 %v353, 4294901760
  %355 = vmatmul.f32.gmra.mxu0 %v354
  %v356 = vpop.f32.mrf.mxu0
  %v357 = vadd.f32 %v326, %v356
  %358 = vdwg.mxu0
  %359 = vmatpush.msra.mxu0 0.0
  %360 = vmatpush.msra.mxu0 0.0
  %361 = vmatpush.msra.mxu0 0.0
  %362 = vmatpush.msra.mxu0 0.0
  %363 = vmatpush.msra.mxu0 0.0
  %364 = vmatpush.msra.mxu0 0.0
  %365 = vmatpush.msra.mxu0 0.0
  %366 = vmatpush.msra.mxu0 0.0
  %367 = vmatpush.msra.mxu0 0.0
  %368 = vmatpush.msra.mxu0 0.0
  %369 = vmatpush.msra.mxu0 0.0
  %370 = vmatpush.msra.mxu0 0.0
  %371 = vmatpush.msra.mxu0 0.0
  %372 = vmatpush.msra.mxu0 0.0
  %v373 = vand.u32 %v18, 4294901760
  %v374 = vsub.f32 %v18, %v373
  %v375 = vand.u32 %v374, 4294901760
  %376 = vmatpush.msra.mxu0 %v375
  %v377 = vand.u32 %v17, 4294901760
  %v378 = vsub.f32 %v17, %v377
  %v379 = vand.u32 %v378, 4294901760
  %380 = vmatpush.msra.mxu0 %v379
  %v381 = vand.u32 %v222, 4294901760
  %382 = vmatmul.f32.gmra.mxu0 %v381
  %v383 = vpop.f32.mrf.mxu0
  %v384 = vadd.f32 %v351, %v383
  %v385 = vand.u32 %v225, 4294901760
  %386 = vmatmul.f32.gmra.mxu0 %v385
  %v387 = vpop.f32.mrf.mxu0
  %v388 = vadd.f32 %v357, %v387
  %389 = vdwg.mxu0
  %390 = vmatpush.msra.mxu0 0.0
  %391 = vmatpush.msra.mxu0 0.0
  %392 = vmatpush.msra.mxu0 0.0
  %393 = vmatpush.msra.mxu0 0.0
  %394 = vmatpush.msra.mxu0 0.0
  %395 = vmatpush.msra.mxu0 0.0
  %396 = vmatpush.msra.mxu0 0.0
  %397 = vmatpush.msra.mxu0 0.0
  %398 = vmatpush.msra.mxu0 0.0
  %399 = vmatpush.msra.mxu0 0.0
  %400 = vmatpush.msra.mxu0 0.0
  %401 = vmatpush.msra.mxu0 0.0
  %402 = vmatpush.msra.mxu0 0.0
  %403 = vmatpush.msra.mxu0 0.0
  %v404 = vand.u32 %v18, 4294901760
  %405 = vmatpush.msra.mxu0 %v404
  %v406 = vand.u32 %v17, 4294901760
  %407 = vmatpush.msra.mxu0 %v406
  %v408 = vand.u32 %v222, 4294901760
  %409 = vmatmul.f32.gmra.mxu0 %v408
  %v410 = vpop.f32.mrf.mxu0
  %v411 = vadd.f32 %v384, %v410
  %v412 = vand.u32 %v225, 4294901760
  %413 = vmatmul.f32.gmra.mxu0 %v412
  %v414 = vpop.f32.mrf.mxu0
  %v415 = vadd.f32 %v388, %v414
  %416 = vdwg.mxu0
  %v417 = vmul.f32 %v17, 2.0
  %v418 = vmul.f32 %v18, 2.0
  %v419 = vadd.f32 %v417, %v215
  %v420 = vadd.f32 %v418, %v219
  %v421 = vadd.f32 %v419, %v411
  %v422 = vadd.f32 %v420, %v415
  %v424 = vperm.slane %v21, 0
  %v426 = vmul.f32 %v17, %v424
  %v427 = vmul.f32 %v18, %v424
  %v428 = vsel %vm24, %v426, 0.0
  %429 = vadd.xlane.f32.xlu0 %v428
  %v430 = vpop.xlane.xlu0 %429
  %v431 = vsel %vm24, %v427, 0.0
  %432 = vadd.xlane.f32.xlu0 %v431
  %v433 = vpop.xlane.xlu0 %432
  %v434 = vmul.f32 %v215, %v424
  %v435 = vmul.f32 %v219, %v424
  %v436 = vsel %vm24, %v434, 0.0
  %437 = vadd.xlane.f32.xlu0 %v436
  %v438 = vpop.xlane.xlu0 %437
  %v439 = vsel %vm24, %v435, 0.0
  %440 = vadd.xlane.f32.xlu0 %v439
  %v441 = vpop.xlane.xlu0 %440
  %v442 = vmul.f32 %v19, 4.0
  %v443 = vmul.f32 %v20, 4.0
  %v444 = vmul.f32 %v430, 2.0
  %v445 = vmul.f32 %v433, 2.0
  %v446 = vadd.f32 %v442, %v444
  %v447 = vadd.f32 %v443, %v445
  %v448 = vadd.f32 %v446, %v438
  %v449 = vadd.f32 %v447, %v441
  %451 = vset.pattern.permute.xlu0 0
  %452 = vperm.xlu0 %451, %v448
  %v453 = vpop.permute.xlu0 %452
  %456 = vset.pattern.permute.xlu0 0
  %457 = vperm.xlu0 %456, %v449
  %v458 = vpop.permute.xlu0 %457
  %v461 = vsel %vm24, %v421, 0
  %v464 = vsel %vm24, %v422, 0
  %466 = vmatpush.msra.mxu0 0.0
  %467 = vmatpush.msra.mxu0 0.0
  %468 = vmatpush.msra.mxu0 0.0
  %469 = vmatpush.msra.mxu0 0.0
  %470 = vmatpush.msra.mxu0 0.0
  %471 = vmatpush.msra.mxu0 0.0
  %472 = vmatpush.msra.mxu0 0.0
  %473 = vmatpush.msra.mxu0 0.0
  %474 = vmatpush.msra.mxu0 0.0
  %475 = vmatpush.msra.mxu0 0.0
  %476 = vmatpush.msra.mxu0 0.0
  %477 = vmatpush.msra.mxu0 0.0
  %478 = vmatpush.msra.mxu0 0.0
  %479 = vmatpush.msra.mxu0 0.0
  %v480 = vand.u32 %v23, 4294901760
  %481 = vmatpush.msra.mxu0 %v480
  %v482 = vand.u32 %v22, 4294901760
  %483 = vmatpush.msra.mxu0 %v482
  %v484 = vand.u32 %v461, 4294901760
  %v485 = vsub.f32 %v461, %v484
  %v486 = vand.u32 %v485, 4294901760
  %v487 = vsub.f32 %v485, %v486
  %v488 = vand.u32 %v487, 4294901760
  %489 = vmatmul.f32.gmra.mxu0 %v488
  %v490 = vpop.f32.mrf.mxu0
  %v491 = vadd.f32 %v453, %v490
  %v492 = vand.u32 %v464, 4294901760
  %v493 = vsub.f32 %v464, %v492
  %v494 = vand.u32 %v493, 4294901760
  %v495 = vsub.f32 %v493, %v494
  %v496 = vand.u32 %v495, 4294901760
  %497 = vmatmul.f32.gmra.mxu0 %v496
  %v498 = vpop.f32.mrf.mxu0
  %v499 = vadd.f32 %v458, %v498
  %500 = vdwg.mxu0
  %501 = vmatpush.msra.mxu0 0.0
  %502 = vmatpush.msra.mxu0 0.0
  %503 = vmatpush.msra.mxu0 0.0
  %504 = vmatpush.msra.mxu0 0.0
  %505 = vmatpush.msra.mxu0 0.0
  %506 = vmatpush.msra.mxu0 0.0
  %507 = vmatpush.msra.mxu0 0.0
  %508 = vmatpush.msra.mxu0 0.0
  %509 = vmatpush.msra.mxu0 0.0
  %510 = vmatpush.msra.mxu0 0.0
  %511 = vmatpush.msra.mxu0 0.0
  %512 = vmatpush.msra.mxu0 0.0
  %513 = vmatpush.msra.mxu0 0.0
  %514 = vmatpush.msra.mxu0 0.0
  %v515 = vand.u32 %v23, 4294901760
  %v516 = vsub.f32 %v23, %v515
  %v517 = vand.u32 %v516, 4294901760
  %v518 = vsub.f32 %v516, %v517
  %v519 = vand.u32 %v518, 4294901760
  %520 = vmatpush.msra.mxu0 %v519
  %v521 = vand.u32 %v22, 4294901760
  %v522 = vsub.f32 %v22, %v521
  %v523 = vand.u32 %v522, 4294901760
  %v524 = vsub.f32 %v522, %v523
  %v525 = vand.u32 %v524, 4294901760
  %526 = vmatpush.msra.mxu0 %v525
  %v527 = vand.u32 %v461, 4294901760
  %528 = vmatmul.f32.gmra.mxu0 %v527
  %v529 = vpop.f32.mrf.mxu0
  %v530 = vadd.f32 %v491, %v529
  %v531 = vand.u32 %v464, 4294901760
  %532 = vmatmul.f32.gmra.mxu0 %v531
  %v533 = vpop.f32.mrf.mxu0
  %v534 = vadd.f32 %v499, %v533
  %535 = vdwg.mxu0
  %536 = vmatpush.msra.mxu0 0.0
  %537 = vmatpush.msra.mxu0 0.0
  %538 = vmatpush.msra.mxu0 0.0
  %539 = vmatpush.msra.mxu0 0.0
  %540 = vmatpush.msra.mxu0 0.0
  %541 = vmatpush.msra.mxu0 0.0
  %542 = vmatpush.msra.mxu0 0.0
  %543 = vmatpush.msra.mxu0 0.0
  %544 = vmatpush.msra.mxu0 0.0
  %545 = vmatpush.msra.mxu0 0.0
  %546 = vmatpush.msra.mxu0 0.0
  %547 = vmatpush.msra.mxu0 0.0
  %548 = vmatpush.msra.mxu0 0.0
  %549 = vmatpush.msra.mxu0 0.0
  %v550 = vand.u32 %v23, 4294901760
  %v551 = vsub.f32 %v23, %v550
  %552 = vmatpush.msra.mxu0 %v551
  %v553 = vand.u32 %v22, 4294901760
  %v554 = vsub.f32 %v22, %v553
  %555 = vmatpush.msra.mxu0 %v554
  %v556 = vand.u32 %v461, 4294901760
  %v557 = vsub.f32 %v461, %v556
  %558 = vmatmul.f32.gmra.mxu0 %v557
  %v559 = vpop.f32.mrf.mxu0
  %v560 = vadd.f32 %v530, %v559
  %v561 = vand.u32 %v464, 4294901760
  %v562 = vsub.f32 %v464, %v561
  %563 = vmatmul.f32.gmra.mxu0 %v562
  %v564 = vpop.f32.mrf.mxu0
  %v565 = vadd.f32 %v534, %v564
  %566 = vdwg.mxu0
  %567 = vmatpush.msra.mxu0 0.0
  %568 = vmatpush.msra.mxu0 0.0
  %569 = vmatpush.msra.mxu0 0.0
  %570 = vmatpush.msra.mxu0 0.0
  %571 = vmatpush.msra.mxu0 0.0
  %572 = vmatpush.msra.mxu0 0.0
  %573 = vmatpush.msra.mxu0 0.0
  %574 = vmatpush.msra.mxu0 0.0
  %575 = vmatpush.msra.mxu0 0.0
  %576 = vmatpush.msra.mxu0 0.0
  %577 = vmatpush.msra.mxu0 0.0
  %578 = vmatpush.msra.mxu0 0.0
  %579 = vmatpush.msra.mxu0 0.0
  %580 = vmatpush.msra.mxu0 0.0
  %v581 = vand.u32 %v23, 4294901760
  %582 = vmatpush.msra.mxu0 %v581
  %v583 = vand.u32 %v22, 4294901760
  %584 = vmatpush.msra.mxu0 %v583
  %v585 = vand.u32 %v461, 4294901760
  %v586 = vsub.f32 %v461, %v585
  %v587 = vand.u32 %v586, 4294901760
  %588 = vmatmul.f32.gmra.mxu0 %v587
  %v589 = vpop.f32.mrf.mxu0
  %v590 = vadd.f32 %v560, %v589
  %v591 = vand.u32 %v464, 4294901760
  %v592 = vsub.f32 %v464, %v591
  %v593 = vand.u32 %v592, 4294901760
  %594 = vmatmul.f32.gmra.mxu0 %v593
  %v595 = vpop.f32.mrf.mxu0
  %v596 = vadd.f32 %v565, %v595
  %597 = vdwg.mxu0
  %598 = vmatpush.msra.mxu0 0.0
  %599 = vmatpush.msra.mxu0 0.0
  %600 = vmatpush.msra.mxu0 0.0
  %601 = vmatpush.msra.mxu0 0.0
  %602 = vmatpush.msra.mxu0 0.0
  %603 = vmatpush.msra.mxu0 0.0
  %604 = vmatpush.msra.mxu0 0.0
  %605 = vmatpush.msra.mxu0 0.0
  %606 = vmatpush.msra.mxu0 0.0
  %607 = vmatpush.msra.mxu0 0.0
  %608 = vmatpush.msra.mxu0 0.0
  %609 = vmatpush.msra.mxu0 0.0
  %610 = vmatpush.msra.mxu0 0.0
  %611 = vmatpush.msra.mxu0 0.0
  %v612 = vand.u32 %v23, 4294901760
  %v613 = vsub.f32 %v23, %v612
  %v614 = vand.u32 %v613, 4294901760
  %615 = vmatpush.msra.mxu0 %v614
  %v616 = vand.u32 %v22, 4294901760
  %v617 = vsub.f32 %v22, %v616
  %v618 = vand.u32 %v617, 4294901760
  %619 = vmatpush.msra.mxu0 %v618
  %v620 = vand.u32 %v461, 4294901760
  %621 = vmatmul.f32.gmra.mxu0 %v620
  %v622 = vpop.f32.mrf.mxu0
  %v623 = vadd.f32 %v590, %v622
  %v624 = vand.u32 %v464, 4294901760
  %625 = vmatmul.f32.gmra.mxu0 %v624
  %v626 = vpop.f32.mrf.mxu0
  %v627 = vadd.f32 %v596, %v626
  %628 = vdwg.mxu0
  %629 = vmatpush.msra.mxu0 0.0
  %630 = vmatpush.msra.mxu0 0.0
  %631 = vmatpush.msra.mxu0 0.0
  %632 = vmatpush.msra.mxu0 0.0
  %633 = vmatpush.msra.mxu0 0.0
  %634 = vmatpush.msra.mxu0 0.0
  %635 = vmatpush.msra.mxu0 0.0
  %636 = vmatpush.msra.mxu0 0.0
  %637 = vmatpush.msra.mxu0 0.0
  %638 = vmatpush.msra.mxu0 0.0
  %639 = vmatpush.msra.mxu0 0.0
  %640 = vmatpush.msra.mxu0 0.0
  %641 = vmatpush.msra.mxu0 0.0
  %642 = vmatpush.msra.mxu0 0.0
  %v643 = vand.u32 %v23, 4294901760
  %644 = vmatpush.msra.mxu0 %v643
  %v645 = vand.u32 %v22, 4294901760
  %646 = vmatpush.msra.mxu0 %v645
  %v647 = vand.u32 %v461, 4294901760
  %648 = vmatmul.f32.gmra.mxu0 %v647
  %v649 = vpop.f32.mrf.mxu0
  %v650 = vadd.f32 %v623, %v649
  %v651 = vand.u32 %v464, 4294901760
  %652 = vmatmul.f32.gmra.mxu0 %v651
  %v653 = vpop.f32.mrf.mxu0
  %v654 = vadd.f32 %v627, %v653
  %655 = vdwg.mxu0
  %v656 = vmax.f32 %v650, 0.0
  %v657 = vmax.f32 %v654, 0.0
  %vm658 = vcmask 523264
  %659 = vst.msk [vmem:[%s4] sm:$0xff] %vm658, %v656
  %660 = vst.msk [vmem:[%s4 + $0x8] sm:$0xff] %vm658, %v657
  // Predicated region
  $region18: #{model_forward.1} parent=0 // pred_check
    _
  $region19: #{model_forward.1} parent=0 // pred_check_branch
    %662 = sbr.rel (0) target = $region21
  $region20: #{model_forward.1} parent=0 // pred_region
    _
  $region21: #{model_forward.1} parent=0 // pred_fallthru
    _
  // Predicated region
  $region22: #{model_forward.1} parent=0 // pred_check
    _
  $region23: #{model_forward.1} parent=0 // pred_check_branch
    %664 = sbr.rel (0) target = $region25
  $region24: #{model_forward.1} parent=0 // pred_region
    _
  $region25: #{model_forward.1} parent=0 // pred_fallthru
    _

</llo_original>
